<compile_context>
chip_gen: v7x
topology: tpu7x:2x2x1
jax: 0.10.0
libtpu: 0.0.40
codegen_flags: <defaults>
</compile_context>

<pallas_src>
import jax
import jax.numpy as jnp
from jax import lax
from jax.experimental import pallas as pl
from jax.experimental.pallas import tpu as pltpu

SLAB_W = 8      # packed per-point slab rows: [x, y, z, r, fcx, fcy, fcz, 1]


def _round_up(x, m):
    return (x + m - 1) // m * m


def _seg_mean_kernel(slab_ref, segc_ref, mean_ref, acc_ref):
    """Pass A: per-voxel mean of the packed slab (DynamicScatter, average).

    slab_ref: (8, tN) f32, points on lanes.  segc_ref: (tN, 1) int32 seg ids.
    mean_ref / acc_ref: (8, tV) f32, voxels on lanes (lane-dense).
    """
    i = pl.program_id(0)                       # V tile (parallel)
    j = pl.program_id(1)                       # N tile (reduction)
    tv = acc_ref.shape[1]

    @pl.when(j == 0)
    def _():
        acc_ref[...] = jnp.zeros_like(acc_ref)

    segc = segc_ref[...]                                            # (tN, 1)
    tn = segc.shape[0]
    vids = lax.broadcasted_iota(jnp.int32, (tn, tv), 1) + i * tv
    mask_nt = (segc == vids).astype(jnp.float32)                    # (tN, tV)
    # One MXU matmul with lane-dense output width tV: rows 0..6 = feature
    # sums, row 7 (the slab's ones row) = per-voxel point count.
    acc_ref[...] += jnp.dot(slab_ref[...], mask_nt,
                            preferred_element_type=jnp.float32)

    @pl.when(j == pl.num_programs(1) - 1)
    def _():
        cnt = acc_ref[SLAB_W - 1:SLAB_W, :]                         # (1, tV)
        mean_ref[...] = acc_ref[...] / jnp.maximum(cnt, 1.0)


def _pfn_max_kernel(slab_ref, segr_ref, segc_ref, first_ref, mean_ref, w_ref,
                    out_ref, acc_ref):
    """Pass B: fused Linear+BN+ReLU + per-voxel max (DynamicScatter, max).

    slab_ref: (8, tN);  segr_ref/first_ref: (1, tN);  segc_ref: (tN, 1);
    mean_ref: (8, tV);  w_ref: (C, 16);  out_ref/acc_ref: (C, tV).
    Points are sorted by voxel id, so segments are contiguous along lanes.
    """
    i = pl.program_id(0)
    j = pl.program_id(1)
    tv = acc_ref.shape[1]

    @pl.when(j == 0)
    def _():
        acc_ref[...] = jnp.zeros_like(acc_ref)

    slab = slab_ref[...]                                            # (8, tN)
    segr = segr_ref[...]                                            # (1, tN)
    segc = segc_ref[...]                                            # (tN, 1)
    tn = slab.shape[1]
    v0 = i * tv

    # Membership masks in both orientations, built directly from the two seg
    # layouts (no in-kernel transposes).
    mask_vn = ((lax.broadcasted_iota(jnp.int32, (tv, tn), 0) + v0)
               == segr).astype(jnp.float32)                         # (tV, tN)
    mask_nt = (segc ==
               (lax.broadcasted_iota(jnp.int32, (tn, tv), 1) + v0)
               ).astype(jnp.float32)                                # (tN, tV)

    # Map this V tile's voxel means back to its member points.  Points whose
    # voxel lies outside this V tile get 0 here; they are excluded from the
    # scatter below, so their (garbage) pf never contributes.
    pts_mean = jnp.dot(mean_ref[...], mask_vn,
                       preferred_element_type=jnp.float32)          # (8, tN)

    # Fused Linear(10->C)+BN(eval)+ReLU: one K=16 matmul.  BN scale is folded
    # into the weights, BN shift rides the slab's ones row, and the
    # [raw | f_cluster | f_center] concat is folded away algebraically.
    x = jnp.concatenate([slab, pts_mean], axis=0)                   # (16, tN)
    pf = jnp.maximum(
        jnp.dot(w_ref[...], x, preferred_element_type=jnp.float32), 0.0)

    # Bidirectional log-step segmented max along the (sorted, contiguous)
    # point/lane axis: after ceil(log2 tN) sweeps every point holds the
    # within-tile max of its segment.  Circular wrap is safe: a wrapped lane
    # only matches when it carries the same segment id (same voxel).
    steps = max(1, (tn - 1).bit_length())
    for k in range(steps):
        s = 1 << k
        shifts = (s,) if 2 * s == tn else (s, tn - s)
        for shift in shifts:
            same = segr == pltpu.roll(segr, shift=shift, axis=1)    # (1, tN)
            pf = jnp.where(
                same,
                jnp.maximum(pf, pltpu.roll(pf, shift=shift, axis=1)),
                pf)

    # Select exactly one point per segment per tile: the segment's globally
    # first point if it lies in this tile, else lane 0 (a segment that began
    # in an earlier tile starts this tile at lane 0 by contiguity).
    lane = lax.broadcasted_iota(jnp.int32, (1, tn), 1)
    sel = jnp.logical_or(first_ref[...] != 0, lane == 0)            # (1, tN)
    pf_sel = jnp.where(sel, pf, 0.0)                                # (C, tN)

    # Scatter: each voxel column of mask_nt has exactly one selected nonzero,
    # so this matmul reproduces the tile-local segment max (0 for voxels
    # absent from the tile).  pf >= 0, so a running max over N tiles yields
    # the full segment max and empty voxels stay 0.
    acc_ref[...] = jnp.maximum(
        acc_ref[...],
        jnp.dot(pf_sel, mask_nt, preferred_element_type=jnp.float32))

    @pl.when(j == pl.num_programs(1) - 1)
    def _():
        out_ref[...] = acc_ref[...]


def dynamic_pillar_feature_net(features, coors, w_t, bn_scale, bn_shift, *,
                               voxel_size, point_cloud_range, v_max,
                               tile_v=256, tile_n=512):
    """DynamicPillarFeatureNet.forward.

    features: (N, 4) f32 [x, y, z, r];  coors: (N, 4) int (batch, z, y, x)
    w_t: (10, C_out) Linear weight (transposed);  bn_scale/bn_shift: (C_out,)
    eval-mode BN1d folded scale/shift.
    Returns (voxel_feats (v_max, C_out), voxel_coors (v_max, 4)); unused voxel
    slots have coors == -1 and feats == 0.
    """
    n = features.shape[0]
    c_out = w_t.shape[1]
    assert c_out % 8 == 0, "output channels must be a multiple of 8"
    assert tile_v % 128 == 0 and tile_n % 128 == 0
    assert tile_n & (tile_n - 1) == 0, "tile_n must be a power of two"

    vx, vy, vz = (float(s) for s in voxel_size)
    x_off = vx / 2.0 + float(point_cloud_range[0])
    y_off = vy / 2.0 + float(point_cloud_range[1])
    z_off = vz / 2.0 + float(point_cloud_range[2])
    canvas_y = int(round((point_cloud_range[4] - point_cloud_range[1]) / vy))
    canvas_x = int(round((point_cloud_range[3] - point_cloud_range[0]) / vx))

    coors = coors.astype(jnp.int32)
    feats = features.astype(jnp.float32)

    # ---- voxel ids, sort points by id (contiguous segments), compact to a
    #      static v_max slot table (plain-JAX glue: DynamicScatter's
    #      dynamically sized unique has no Pallas equivalent) ----
    vid = (coors[:, 0] * canvas_y * canvas_x
           + coors[:, 2] * canvas_x + coors[:, 3])
    order = jnp.argsort(vid)                       # stable: keeps point order
    vid_s = vid[order]
    coors_s = coors[order]
    feats_s = feats[order]
    is_new = jnp.concatenate(
        [jnp.ones((1,), jnp.bool_), vid_s[1:] != vid_s[:-1]])
    seg = jnp.cumsum(is_new.astype(jnp.int32)) - 1          # (N,), sorted

    idx = jnp.arange(n, dtype=jnp.int32)
    first_idx = jax.ops.segment_min(
        idx, jnp.minimum(seg, v_max), num_segments=v_max + 1)[:v_max]
    occupied = first_idx < n
    voxel_coors = jnp.where(occupied[:, None],
                            coors_s[jnp.clip(first_idx, 0, n - 1)],
                            jnp.int32(-1))                  # (v_max, 4)

    # ---- pack per-point inputs (sorted order) into one lane-dense slab:
    #      rows = [x, y, z, r, f_center_x, f_center_y, f_center_z, 1] ----
    fcx = feats_s[:, 0] - (coors_s[:, 3].astype(jnp.float32) * vx + x_off)
    fcy = feats_s[:, 1] - (coors_s[:, 2].astype(jnp.float32) * vy + y_off)
    fcz = feats_s[:, 2] - (coors_s[:, 1].astype(jnp.float32) * vz + z_off)
    slab_t = jnp.stack([feats_s[:, 0], feats_s[:, 1], feats_s[:, 2],
                        feats_s[:, 3], fcx, fcy, fcz,
                        jnp.ones((n,), jnp.float32)], axis=0)       # (8, N)

    # ---- fold BN scale into the weights, BN shift into a bias row (driven by
    #      the ones row) and the [raw|f_cluster|f_center] concat into a single
    #      (C_out, 16) weight acting on [slab; pts_mean] ----
    bn_scale = bn_scale.reshape(1, -1).astype(jnp.float32)
    bn_shift = bn_shift.reshape(-1).astype(jnp.float32)
    w_eff = w_t.astype(jnp.float32) * bn_scale                      # (10, C)
    w_point = jnp.stack([w_eff[0] + w_eff[4], w_eff[1] + w_eff[5],
                         w_eff[2] + w_eff[6], w_eff[3],
                         w_eff[7], w_eff[8], w_eff[9], bn_shift], axis=0)
    w_mean = jnp.concatenate([-w_eff[4:7],
                              jnp.zeros((SLAB_W - 3, c_out), jnp.float32)],
                             axis=0)
    w_all_t = jnp.concatenate([w_point, w_mean], axis=0).T          # (C, 16)

    # ---- pad N / V to tile multiples; padded points get an out-of-range
    #      segment sentinel so they never match any voxel lane ----
    n_pad = _round_up(max(n, tile_n), tile_n)
    v_pad = _round_up(max(v_max, tile_v), tile_v)
    sentinel = v_pad
    slab_t = jnp.pad(slab_t, ((0, 0), (0, n_pad - n)))
    seg_p = jnp.pad(seg, (0, n_pad - n), constant_values=sentinel)
    seg_row = seg_p.reshape(1, n_pad)
    seg_col = seg_p.reshape(n_pad, 1)
    first_row = jnp.pad(is_new.astype(jnp.int32),
                        (0, n_pad - n)).reshape(1, n_pad)

    grid = (v_pad // tile_v, n_pad // tile_n)
    cparams = pltpu.CompilerParams(
        dimension_semantics=("parallel", "arbitrary"),
        vmem_limit_bytes=32 * 1024 * 1024)

    slab_spec = pl.BlockSpec((SLAB_W, tile_n), lambda i, j: (0, j))
    segr_spec = pl.BlockSpec((1, tile_n), lambda i, j: (0, j))
    segc_spec = pl.BlockSpec((tile_n, 1), lambda i, j: (j, 0))
    first_spec = pl.BlockSpec((1, tile_n), lambda i, j: (0, j))
    mean_spec = pl.BlockSpec((SLAB_W, tile_v), lambda i, j: (0, i))
    w_spec = pl.BlockSpec((c_out, 2 * SLAB_W), lambda i, j: (0, 0))
    feats_spec = pl.BlockSpec((c_out, tile_v), lambda i, j: (0, i))

    # Pass A: per-voxel means of the packed slab (cluster_scatter, average).
    voxel_mean_t = pl.pallas_call(
        _seg_mean_kernel,
        out_shape=jax.ShapeDtypeStruct((SLAB_W, v_pad), jnp.float32),
        grid=grid,
        in_specs=[slab_spec, segc_spec],
        out_specs=mean_spec,
        scratch_shapes=[pltpu.VMEM((SLAB_W, tile_v), jnp.float32)],
        compiler_params=cparams,
    )(slab_t, seg_col)

    # Pass B: fused PFN layer + per-voxel max (pfn_scatter, max).
    voxel_feats_t = pl.pallas_call(
        _pfn_max_kernel,
        out_shape=jax.ShapeDtypeStruct((c_out, v_pad), jnp.float32),
        grid=grid,
        in_specs=[slab_spec, segr_spec, segc_spec, first_spec, mean_spec,
                  w_spec],
        out_specs=feats_spec,
        scratch_shapes=[pltpu.VMEM((c_out, tile_v), jnp.float32)],
        compiler_params=cparams,
    )(slab_t, seg_row, seg_col, first_row, voxel_mean_t, w_all_t)

    voxel_feats = jnp.transpose(voxel_feats_t)[:v_max, :]
    return voxel_feats, voxel_coors


def _reference_forward(features, coors, w_t, bn_scale, bn_shift,
                       voxel_size, pc_range, v_max):
    """Pure-JAX reference of the module's forward (unfolded formulation)."""
    vx, vy, vz = (float(s) for s in voxel_size)
    x_off = vx / 2.0 + pc_range[0]
    y_off = vy / 2.0 + pc_range[1]
    z_off = vz / 2.0 + pc_range[2]
    canvas_y = int(round((pc_range[4] - pc_range[1]) / vy))
    canvas_x = int(round((pc_range[3] - pc_range[0]) / vx))
    coors = coors.astype(jnp.int32)
    vid = (coors[:, 0] * canvas_y * canvas_x
           + coors[:, 2] * canvas_x + coors[:, 3])
    uniq, first_idx, inv = jnp.unique(vid, size=v_max, fill_value=-1,
                                      return_index=True, return_inverse=True)
    seg = inv.reshape(-1)
    xyz = features[:, :3]
    cnt = jax.ops.segment_sum(jnp.ones((features.shape[0],), jnp.float32),
                              seg, num_segments=v_max)
    mean = (jax.ops.segment_sum(xyz, seg, num_segments=v_max)
            / jnp.maximum(cnt, 1.0)[:, None])
    f_cluster = xyz - mean[seg]
    f_center = jnp.stack(
        [features[:, 0] - (coors[:, 3].astype(jnp.float32) * vx + x_off),
         features[:, 1] - (coors[:, 2].astype(jnp.float32) * vy + y_off),
         features[:, 2] - (coors[:, 1].astype(jnp.float32) * vz + z_off)],
        axis=-1)
    aug = jnp.concatenate([features, f_cluster, f_center], axis=-1)
    pf = jnp.dot(aug, w_t, precision=jax.lax.Precision.HIGHEST)
    pf = jnp.maximum(pf * bn_scale[None, :] + bn_shift[None, :], 0.0)
    vmax = jax.ops.segment_max(pf, seg, num_segments=v_max)
    vmax = jnp.where(cnt[:, None] > 0, vmax, 0.0)
    vcoors = jnp.where((uniq >= 0)[:, None], coors[first_idx], -1)
    return vmax, vcoors


if __name__ == "__main__":
    key = jax.random.PRNGKey(0)
    k1, k2, k3, k4, k5 = jax.random.split(key, 5)

    # Small shapes consistent with the module's forward (flat dynamic points).
    # N chosen so pass B sees multiple N tiles, tile padding, and segments
    # that span N-tile boundaries.
    N = 1500                     # number of points
    in_channels = 4              # x, y, z, reflectance
    feat_channels = 64
    voxel_size = (4.4, 5.0, 4.0)                      # 16 x 16 pillar canvas
    pc_range = (0.0, -40.0, -3.0, 70.4, 40.0, 1.0)
    v_max = 512                  # >= number of possible pillars (2 * 16 * 16)

    px = jax.random.uniform(k1, (N,), minval=pc_range[0], maxval=pc_range[3])
    py = jax.random.uniform(k2, (N,), minval=pc_range[1], maxval=pc_range[4])
    pz = jax.random.uniform(k3, (N,), minval=pc_range[2], maxval=pc_range[5])
    pr = jax.random.uniform(k4, (N,))
    features = jnp.stack([px, py, pz, pr], axis=-1).astype(jnp.float32)

    batch = (jnp.arange(N) % 2).astype(jnp.int32)
    zbin = jnp.zeros((N,), jnp.int32)
    ybin = jnp.clip(jnp.floor((py - pc_range[1]) / voxel_size[1]), 0, 15)
    xbin = jnp.clip(jnp.floor((px - pc_range[0]) / voxel_size[0]), 0, 15)
    coors = jnp.stack([batch, zbin, ybin.astype(jnp.int32),
                       xbin.astype(jnp.int32)], axis=-1)             # (N, 4)

    # Deterministic parameters: Linear(10->64, bias=False), BN1d(64) in eval
    # mode (folded into scale/shift).
    aug_channels = in_channels + 3 + 3                               # 10
    w = 0.1 * jax.random.normal(k5, (feat_channels, aug_channels), jnp.float32)
    w_t = jnp.transpose(w)                                           # (10, 64)
    gamma = 1.0 + 0.01 * jnp.arange(feat_channels, dtype=jnp.float32)
    beta = 0.01 * jnp.arange(feat_channels, dtype=jnp.float32)
    running_mean = jnp.zeros((feat_channels,), jnp.float32)
    running_var = jnp.ones((feat_channels,), jnp.float32)
    eps = 1e-3
    scale = gamma / jnp.sqrt(running_var + eps)
    bn_scale = scale                                                 # (64,)
    bn_shift = beta - running_mean * scale                           # (64,)

    voxel_feats, voxel_coors = dynamic_pillar_feature_net(
        features, coors, w_t, bn_scale, bn_shift,
        voxel_size=voxel_size, point_cloud_range=pc_range, v_max=v_max)
    jax.block_until_ready((voxel_feats, voxel_coors))

    ref_feats, ref_coors = _reference_forward(
        features, coors, w_t, bn_scale, bn_shift, voxel_size, pc_range, v_max)
    err = float(jnp.max(jnp.abs(voxel_feats - ref_feats)))
    assert err < 5e-2, f"max abs error vs reference: {err}"
    assert bool(jnp.all(voxel_coors == ref_coors)), "voxel_coors mismatch"

    print("KERNEL_OK")
</pallas_src>

<mosaic_0001>
module attributes {stable_mosaic.version = 11 : i64} {
  func.func @_seg_mean_kernel(%arg0: i32, %arg1: i32, %arg2: memref<8x512xf32, #tpu.memory_space<vmem>>, %arg3: memref<512x1xi32, #tpu.memory_space<vmem>>, %arg4: memref<8x256xf32, #tpu.memory_space<vmem>>, %arg5: memref<8x256xf32, #tpu.memory_space<vmem>>) attributes {dimension_semantics = [#tpu.dimension_semantics<parallel>, #tpu.dimension_semantics<arbitrary>], iteration_bounds = array<i64: 2, 3>, scalar_prefetch = 0 : i64, scratch_operands = 1 : i64, tpu.core_type = #tpu.core_type<tc>, window_params = [{transform_indices = @transform_0, window_bounds = array<i64: 8, 512>}, {transform_indices = @transform_1, window_bounds = array<i64: 512, 1>}, {transform_indices = @transform_2, window_bounds = array<i64: 8, 256>}]} {
    %c0_i32 = arith.constant 0 : i32
    %0 = arith.cmpi eq, %arg1, %c0_i32 : i32
    %1 = arith.extui %0 : i1 to i32
    %c0_i32_0 = arith.constant 0 : i32
    %2 = arith.cmpi ne, %1, %c0_i32_0 : i32
    scf.if %2 {
      %cst_9 = arith.constant 0.000000e+00 : f32
      %20 = vector.broadcast %cst_9 : f32 to vector<8x256xf32>
      %c0_10 = arith.constant 0 : index
      %c0_11 = arith.constant 0 : index
      %21 = vector.load %arg5[%c0_10, %c0_11] : memref<8x256xf32, #tpu.memory_space<vmem>>, vector<8x256xf32>
      tpu.vector_store %arg5[%c0_10, %c0_11], %20 {strides = array<i32>} : memref<8x256xf32, #tpu.memory_space<vmem>>, vector<8x256xf32>,
    } else {
    }
    %c0 = arith.constant 0 : index
    %c0_1 = arith.constant 0 : index
    %3 = vector.load %arg3[%c0, %c0_1] : memref<512x1xi32, #tpu.memory_space<vmem>>, vector<512x1xi32>
    %4 = tpu.iota {dimensions = array<i32: 1>} : vector<512x256xi32>
    %c256_i32 = arith.constant 256 : i32
    %5 = arith.muli %arg0, %c256_i32 : i32
    %6 = vector.broadcast %5 : i32 to vector<512x256xi32>
    %7 = arith.addi %4, %6 : vector<512x256xi32>
    %8 = vector.broadcast %3 : vector<512x1xi32> to vector<512x256xi32>
    %9 = arith.cmpi eq, %8, %7 : vector<512x256xi32>
    %10 = arith.extui %9 : vector<512x256xi1> to vector<512x256xi32>
    %11 = arith.sitofp %10 : vector<512x256xi32> to vector<512x256xf32>
    %c0_2 = arith.constant 0 : index
    %c0_3 = arith.constant 0 : index
    %12 = vector.load %arg5[%c0_2, %c0_3] : memref<8x256xf32, #tpu.memory_space<vmem>>, vector<8x256xf32>
    %c0_4 = arith.constant 0 : index
    %c0_5 = arith.constant 0 : index
    %13 = vector.load %arg2[%c0_4, %c0_5] : memref<8x512xf32, #tpu.memory_space<vmem>>, vector<8x512xf32>
    %cst = arith.constant dense<0.000000e+00> : vector<8x256xf32>
    %14 = tpu.matmul %13, %11, %cst {dimension_numbers = #tpu.dot_dimension_numbers<[1], [0], [0], [1], [0, 0, 1, 1], [], []>} : vector<8x512xf32>, vector<512x256xf32>, vector<8x256xf32> -> vector<8x256xf32>
    %15 = arith.addf %12, %14 : vector<8x256xf32>
    %c0_6 = arith.constant 0 : index
    %c0_7 = arith.constant 0 : index
    %16 = vector.load %arg5[%c0_6, %c0_7] : memref<8x256xf32, #tpu.memory_space<vmem>>, vector<8x256xf32>
    tpu.vector_store %arg5[%c0_6, %c0_7], %15 {strides = array<i32>} : memref<8x256xf32, #tpu.memory_space<vmem>>, vector<8x256xf32>,
    %c2_i32 = arith.constant 2 : i32
    %17 = arith.cmpi eq, %arg1, %c2_i32 : i32
    %18 = arith.extui %17 : i1 to i32
    %c0_i32_8 = arith.constant 0 : i32
    %19 = arith.cmpi ne, %18, %c0_i32_8 : i32
    scf.if %19 {
      %c7 = arith.constant 7 : index
      %c0_9 = arith.constant 0 : index
      %20 = vector.load %arg5[%c7, %c0_9] : memref<8x256xf32, #tpu.memory_space<vmem>>, vector<1x256xf32>
      %c0_10 = arith.constant 0 : index
      %c0_11 = arith.constant 0 : index
      %21 = vector.load %arg5[%c0_10, %c0_11] : memref<8x256xf32, #tpu.memory_space<vmem>>, vector<8x256xf32>
      %cst_12 = arith.constant 1.000000e+00 : f32
      %22 = vector.broadcast %cst_12 : f32 to vector<1x256xf32>
      %23 = arith.maximumf %20, %22 : vector<1x256xf32>
      %24 = vector.broadcast %23 : vector<1x256xf32> to vector<8x256xf32>
      %25 = arith.divf %21, %24 : vector<8x256xf32>
      %c0_13 = arith.constant 0 : index
      %c0_14 = arith.constant 0 : index
      %26 = vector.load %arg4[%c0_13, %c0_14] : memref<8x256xf32, #tpu.memory_space<vmem>>, vector<8x256xf32>
      tpu.vector_store %arg4[%c0_13, %c0_14], %25 {strides = array<i32>} : memref<8x256xf32, #tpu.memory_space<vmem>>, vector<8x256xf32>,
    } else {
    }
    return
  }
  func.func @transform_0(%arg0: i32, %arg1: i32) -> (i32, i32) {
    %c0_i32 = arith.constant 0 : i32
    %c0_i32_0 = arith.constant 0 : i32
    return %c0_i32, %arg1 : i32, i32
  }
  func.func @transform_1(%arg0: i32, %arg1: i32) -> (i32, i32) {
    %c0_i32 = arith.constant 0 : i32
    %c0_i32_0 = arith.constant 0 : i32
    return %arg1, %c0_i32 : i32, i32
  }
  func.func @transform_2(%arg0: i32, %arg1: i32) -> (i32, i32) {
    %c0_i32 = arith.constant 0 : i32
    %c0_i32_0 = arith.constant 0 : i32
    return %c0_i32, %arg0 : i32, i32
  }
}

</mosaic_0001>

<llo_original>
// kernel: tpu_custom_call.1
$region0: #{tpu_custom_call.1}
  #allocation0 [shape = 'u32[]', space=smem, size = 0x4, offset = 0x4, fixed_abs, tag = 'smem constant byte address 0x4 - core index']
  #allocation1 [shape = 'u32[144,128]{1,0:T(1,128)}', space=vmem, size = 0x12000, scoped, tag = 'internal scratch']
  #allocation2 [shape = 'f32[8,256]{1,0:T(8,128)}', space=vmem, size = 0x2000, scoped, tag = 'scratch operand']
  %s0 = inlined_call_operand.vmem [shape: f32[8,1536], index: 0, kind: input, shape index: {}]
  %s1 = inlined_call_operand.vmem [shape: s32[1536,1], index: 1, kind: input, shape index: {}]
  %s2 = inlined_call_operand.hbm [shape: f32[8,512], index: 2, kind: output, shape index: {}]
  %s3 = sld [smem:[#allocation0]]
  $region49: #{tpu_custom_call.1} parent=0
    _
  %s5 = ssub.s32 1, %s3
  %s6 = scalar_select 0, %s5, %s3
  $region1: #{tpu_custom_call.1} parent=0
    #allocation3 [shape = 'u8[16384]{0}', space=vmem, size = 0x4000, scoped, tag = 'output window, operand 0']
    #allocation4 [shape = 's32[2]{0}', space=sflag, size = 0x8, scoped, tag = 'scoped memory for tpu_custom_call.1']
    %7 = vsyncpa [#allocation4], 0
    %s8 = scalar_lea.sflag [#allocation4], 1
    %9 = vsyncpa %s8, 0
    loop: start=0, step=1, limit=8
    $region2: #{tpu_custom_call.1} parent=1 // loop_pre_header
      _
    $region3: #{tpu_custom_call.1} parent=1 // loop_header
      %s11 = sphi 0, %s15
      %p12 = scmp.ge.s32.totalorder %s11, 8
      %s18 = sphi 0, %s30
      %s19 = sphi 0, %s26
      %s20 = sphi 0, %s18
      %s21 = sphi 0, %s19
      %s22 = sphi 0, %s20
      %s23 = sphi 0, %s21
      %s33 = sphi 0, %s35
      %s36 = sphi 0, %s33
      %s37 = sphi 0, %s36
      %s53 = sphi 0, %s37
      %s59 = sphi 0, %s61
      %s62 = sphi 0, %s59
      %s63 = sphi 0, %s62
      %s79 = sphi 0, %s63
      %s85 = sphi 0, %s87
      %s88 = sphi 0, %s85
      %s89 = sphi 0, %s88
      %s105 = sphi 0, %s89
    $region4: #{tpu_custom_call.1} parent=1 // loop_header_branch
      %14 = sbr.rel (%p12) target = $region8
    $region5: #{tpu_custom_call.1} parent=1 // loop_body
      %s16 = ssub.s32 %s11, 1
      %s17 = ssub.s32 %s11, 2
      %s24 = sadd.s32 1, %s19
      %p25 = scmp.ge.s32.totalorder %s24, 3
      %s26 = scalar_select %p25, 0, %s24
      %s27 = sadd.s32 1, %s18
      %s28 = scalar_select %p25, %s27, %s18
      %p29 = scmp.ge.s32.totalorder %s28, 2
      %s30 = scalar_select %p29, 0, %s28
      %s31 = ssub.s32 %s19, %s26
      %p32 = scmp.eq.s32.totalorder %s31, 0
      %s34 = sadd.s32 %s33, 1
      %s35 = scalar_select %p32, %s33, %s34
      %p38 = pneg %p32
      %p39 = scmp.eq.s32.totalorder %s11, 5
      %p40 = por %p38, %p39
      %p41 = scmp.ne.s32.totalorder %s33, %s36
      %p42 = scmp.eq.s32.totalorder %s11, 0
      %p43 = por %p41, %p42
      %p44 = scmp.ne.s32.totalorder %s33, %s36
      %p45 = scmp.eq.s32.totalorder %s16, 5
      %p46 = por %p44, %p45
      %p47 = scmp.ne.s32.totalorder %s36, %s37
      %p48 = scmp.eq.s32.totalorder %s16, 0
      %p49 = por %p47, %p48
      %p50 = scmp.ne.s32.totalorder %s36, %s37
      %p51 = scmp.eq.s32.totalorder %s17, 5
      %p52 = por %p50, %p51
      %p54 = scmp.ne.s32.totalorder %s37, %s53
      %p55 = scmp.eq.s32.totalorder %s17, 0
      %p56 = por %p54, %p55
      %s57 = ssub.s32 %s19, %s26
      %p58 = scmp.eq.s32.totalorder %s57, 0
      %s60 = sadd.s32 %s59, 1
      %s61 = scalar_select %p58, %s59, %s60
      %p64 = pneg %p58
      %p65 = scmp.eq.s32.totalorder %s11, 5
      %p66 = por %p64, %p65
      %p67 = scmp.ne.s32.totalorder %s59, %s62
      %p68 = scmp.eq.s32.totalorder %s11, 0
      %p69 = por %p67, %p68
      %p70 = scmp.ne.s32.totalorder %s59, %s62
      %p71 = scmp.eq.s32.totalorder %s16, 5
      %p72 = por %p70, %p71
      %p73 = scmp.ne.s32.totalorder %s62, %s63
      %p74 = scmp.eq.s32.totalorder %s16, 0
      %p75 = por %p73, %p74
      %p76 = scmp.ne.s32.totalorder %s62, %s63
      %p77 = scmp.eq.s32.totalorder %s17, 5
      %p78 = por %p76, %p77
      %p80 = scmp.ne.s32.totalorder %s63, %s79
      %p81 = scmp.eq.s32.totalorder %s17, 0
      %p82 = por %p80, %p81
      %s83 = ssub.s32 %s18, %s30
      %p84 = scmp.eq.s32.totalorder %s83, 0
      %s86 = sadd.s32 %s85, 1
      %s87 = scalar_select %p84, %s85, %s86
      %p90 = pneg %p84
      %p91 = scmp.eq.s32.totalorder %s11, 5
      %p92 = por %p90, %p91
      %p93 = scmp.ne.s32.totalorder %s85, %s88
      %p94 = scmp.eq.s32.totalorder %s11, 0
      %p95 = por %p93, %p94
      %p96 = scmp.ne.s32.totalorder %s85, %s88
      %p97 = scmp.eq.s32.totalorder %s16, 5
      %p98 = por %p96, %p97
      %p99 = scmp.ne.s32.totalorder %s88, %s89
      %p100 = scmp.eq.s32.totalorder %s16, 0
      %p101 = por %p99, %p100
      %p102 = scmp.ne.s32.totalorder %s88, %s89
      %p103 = scmp.eq.s32.totalorder %s17, 5
      %p104 = por %p102, %p103
      %p106 = scmp.ne.s32.totalorder %s89, %s105
      %p107 = scmp.eq.s32.totalorder %s17, 0
      %p108 = por %p106, %p107
      %p109 = scmp.le.s32.totalorder 1, %s11
      %p110 = scmp.lt.s32.totalorder %s11, 7
      %p111 = pnand %p109, %p110
      %p112 = pneg %p111
      // Predicated region
      $region9: #{tpu_custom_call.1} parent=5 // pred_check
        _
      $region10: #{tpu_custom_call.1} parent=5 // pred_check_branch
        %114 = sbr.rel (%p111) target = $region12
      $region11: #{tpu_custom_call.1} parent=5 // pred_region
        %s115 = ssub.s32 %s11, 1
      $region12: #{tpu_custom_call.1} parent=5 // pred_fallthru
        _
      %p116 = scmp.lt.s32.totalorder %s11, 6
      // Predicated region
      $region13: #{tpu_custom_call.1} parent=5 // pred_check
        %p117 = pneg %p116
      $region14: #{tpu_custom_call.1} parent=5 // pred_check_branch
        %119 = sbr.rel (%p117) target = $region16
      $region15: #{tpu_custom_call.1} parent=5 // pred_region
        // Predicated region
        $region17: #{tpu_custom_call.1} parent=15 // pred_check
          %p120 = pneg %p43
        $region18: #{tpu_custom_call.1} parent=15 // pred_check_branch
          %122 = sbr.rel (%p120) target = $region20
        $region19: #{tpu_custom_call.1} parent=15 // pred_region
          %s123 = smul.u32 4, %s19
          %p124 = scmp.lt.s32.totalorder %s123, 11
          %s125 = scalar_select %p124, %s123, 11
          %s126 = smul.addr %s125, 8
          %s127 = scalar_lea.vmem %s0, %s126
          %s128 = smul.u32 4, %s19
        $region20: #{tpu_custom_call.1} parent=15 // pred_fallthru
          _
        // Predicated region
        $region21: #{tpu_custom_call.1} parent=15 // pred_check
          %p129 = pneg %p69
        $region22: #{tpu_custom_call.1} parent=15 // pred_check_branch
          %131 = sbr.rel (%p129) target = $region24
        $region23: #{tpu_custom_call.1} parent=15 // pred_region
          %s132 = smul.u32 64, %s19
          %p133 = scmp.lt.s32.totalorder %s132, 191
          %s134 = scalar_select %p133, %s132, 191
          %s135 = smul.addr %s134, 8
          %s136 = scalar_lea.vmem %s1, %s135
          %s137 = smul.u32 64, %s19
        $region24: #{tpu_custom_call.1} parent=15 // pred_fallthru
          _
      $region16: #{tpu_custom_call.1} parent=5 // pred_fallthru
        _
      %p138 = scmp.le.s32.totalorder 1, %s11
      %p139 = scmp.lt.s32.totalorder %s11, 7
      %p140 = pnand %p138, %p139
      %p141 = pneg %p140
      // Predicated region
      $region25: #{tpu_custom_call.1} parent=5 // pred_check
        _
      $region26: #{tpu_custom_call.1} parent=5 // pred_check_branch
        %143 = sbr.rel (%p140) target = $region28
      $region27: #{tpu_custom_call.1} parent=5 // pred_region
        %s144 = ssub.s32 %s11, 1
        %s145 = smul.u32 4, %s21
        %p146 = scmp.lt.s32.totalorder %s145, 11
        %s147 = scalar_select %p146, %s145, 11
        %s148 = smul.addr %s147, 8
        %s149 = scalar_lea.vmem %s0, %s148
        %p150 = pneg %p49
        %p151 = pneg %p46
        %s152 = smul.u32 64, %s21
        %p153 = scmp.lt.s32.totalorder %s152, 191
        %s154 = scalar_select %p153, %s152, 191
        %s155 = smul.addr %s154, 8
        %s156 = scalar_lea.vmem %s1, %s155
        %p157 = pneg %p75
        %p158 = pneg %p72
        %p159 = pneg %p101
        %p160 = pneg %p98
        %s161 = sand.u32 %s88, 1
        %s162 = scalar_lea.sflag [#allocation4], %s161
        %s163 = sand.u32 %s88, 1
        %s164 = smul.addr %s163, 16
        %s165 = scalar_lea.vmem [#allocation3], %s164
        %s166 = smul.u32 4, %s21
        %p167 = scmp.lt.s32.totalorder %s166, 11
        %s168 = scalar_select %p167, %s166, 11
        %s169 = smul.addr %s168, 8
        %s170 = scalar_lea.vmem %s0, %s169
        %s171 = smul.u32 4, %s21
        %s172 = smul.u32 64, %s21
        %p173 = scmp.lt.s32.totalorder %s172, 191
        %s174 = scalar_select %p173, %s172, 191
        %s175 = smul.addr %s174, 8
        %s176 = scalar_lea.vmem %s1, %s175
        %s177 = smul.u32 64, %s21
        %s178 = smul.u32 2, %s20
        %p179 = scmp.eq.s32.totalorder %s21, 0
        // Predicated region
        $region29: #{tpu_custom_call.1} parent=27 // pred_check
          %p180 = pneg %p179
        $region30: #{tpu_custom_call.1} parent=27 // pred_check_branch
          %182 = sbr.rel (%p180) target = $region32
        $region31: #{tpu_custom_call.1} parent=27 // pred_region
          %183 = vst [vmem:[#allocation2] sm:$0xff] 0.0
          %184 = vst [vmem:[#allocation2 + $0x8] sm:$0xff] 0.0
        $region32: #{tpu_custom_call.1} parent=27 // pred_fallthru
          _
        %v185 = vld [vmem:[%s176] sm:$0xff]
        %v186 = vld [vmem:[%s176 + $0x8] sm:$0xff]
        %v187 = vld [vmem:[%s176 + $0x10] sm:$0xff]
        %v188 = vld [vmem:[%s176 + $0x18] sm:$0xff]
        %v189 = vld [vmem:[%s176 + $0x20] sm:$0xff]
        %v190 = vld [vmem:[%s176 + $0x28] sm:$0xff]
        %v191 = vld [vmem:[%s176 + $0x30] sm:$0xff]
        %v192 = vld [vmem:[%s176 + $0x38] sm:$0xff]
        %v193 = vld [vmem:[%s176 + $0x40] sm:$0xff]
        %v194 = vld [vmem:[%s176 + $0x48] sm:$0xff]
        %v195 = vld [vmem:[%s176 + $0x50] sm:$0xff]
        %v196 = vld [vmem:[%s176 + $0x58] sm:$0xff]
        %v197 = vld [vmem:[%s176 + $0x60] sm:$0xff]
        %v198 = vld [vmem:[%s176 + $0x68] sm:$0xff]
        %v199 = vld [vmem:[%s176 + $0x70] sm:$0xff]
        %v200 = vld [vmem:[%s176 + $0x78] sm:$0xff]
        %v201 = vld [vmem:[%s176 + $0x80] sm:$0xff]
        %v202 = vld [vmem:[%s176 + $0x88] sm:$0xff]
        %v203 = vld [vmem:[%s176 + $0x90] sm:$0xff]
        %v204 = vld [vmem:[%s176 + $0x98] sm:$0xff]
        %v205 = vld [vmem:[%s176 + $0xa0] sm:$0xff]
        %v206 = vld [vmem:[%s176 + $0xa8] sm:$0xff]
        %v207 = vld [vmem:[%s176 + $0xb0] sm:$0xff]
        %v208 = vld [vmem:[%s176 + $0xb8] sm:$0xff]
        %v209 = vld [vmem:[%s176 + $0xc0] sm:$0xff]
        %v210 = vld [vmem:[%s176 + $0xc8] sm:$0xff]
        %v211 = vld [vmem:[%s176 + $0xd0] sm:$0xff]
        %v212 = vld [vmem:[%s176 + $0xd8] sm:$0xff]
        %v213 = vld [vmem:[%s176 + $0xe0] sm:$0xff]
        %v214 = vld [vmem:[%s176 + $0xe8] sm:$0xff]
        %v215 = vld [vmem:[%s176 + $0xf0] sm:$0xff]
        %v216 = vld [vmem:[%s176 + $0xf8] sm:$0xff]
        %v217 = vld [vmem:[%s176 + $0x100] sm:$0xff]
        %v218 = vld [vmem:[%s176 + $0x108] sm:$0xff]
        %v219 = vld [vmem:[%s176 + $0x110] sm:$0xff]
        %v220 = vld [vmem:[%s176 + $0x118] sm:$0xff]
        %v221 = vld [vmem:[%s176 + $0x120] sm:$0xff]
        %v222 = vld [vmem:[%s176 + $0x128] sm:$0xff]
        %v223 = vld [vmem:[%s176 + $0x130] sm:$0xff]
        %v224 = vld [vmem:[%s176 + $0x138] sm:$0xff]
        %v225 = vld [vmem:[%s176 + $0x140] sm:$0xff]
        %v226 = vld [vmem:[%s176 + $0x148] sm:$0xff]
        %v227 = vld [vmem:[%s176 + $0x150] sm:$0xff]
        %v228 = vld [vmem:[%s176 + $0x158] sm:$0xff]
        %v229 = vld [vmem:[%s176 + $0x160] sm:$0xff]
        %v230 = vld [vmem:[%s176 + $0x168] sm:$0xff]
        %v231 = vld [vmem:[%s176 + $0x170] sm:$0xff]
        %v232 = vld [vmem:[%s176 + $0x178] sm:$0xff]
        %v233 = vld [vmem:[%s176 + $0x180] sm:$0xff]
        %v234 = vld [vmem:[%s176 + $0x188] sm:$0xff]
        %v235 = vld [vmem:[%s176 + $0x190] sm:$0xff]
        %v236 = vld [vmem:[%s176 + $0x198] sm:$0xff]
        %v237 = vld [vmem:[%s176 + $0x1a0] sm:$0xff]
        %v238 = vld [vmem:[%s176 + $0x1a8] sm:$0xff]
        %v239 = vld [vmem:[%s176 + $0x1b0] sm:$0xff]
        %v240 = vld [vmem:[%s176 + $0x1b8] sm:$0xff]
        %v241 = vld [vmem:[%s176 + $0x1c0] sm:$0xff]
        %v242 = vld [vmem:[%s176 + $0x1c8] sm:$0xff]
        %v243 = vld [vmem:[%s176 + $0x1d0] sm:$0xff]
        %v244 = vld [vmem:[%s176 + $0x1d8] sm:$0xff]
        %v245 = vld [vmem:[%s176 + $0x1e0] sm:$0xff]
        %v246 = vld [vmem:[%s176 + $0x1e8] sm:$0xff]
        %v247 = vld [vmem:[%s176 + $0x1f0] sm:$0xff]
        %v248 = vld [vmem:[%s176 + $0x1f8] sm:$0xff]
        %v249 = vlaneseq
        %v250 = vand.u32 %v249, 127
        %v251 = vadd.s32 %v250, 128
        %s252 = smul.u32 %s20, 256
        %v253 = vstv %s252
        %v254 = vadd.s32 %v250, %v253
        %v255 = vadd.s32 %v251, %v253
        %256 = vset.pattern.permute.xlu0 0
        %257 = vperm.xlu0 %256, %v185
        %v258 = vpop.permute.xlu0 %257
        %259 = vset.pattern.permute.xlu0 0
        %260 = vperm.xlu0 %259, %v186
        %v261 = vpop.permute.xlu0 %260
        %262 = vset.pattern.permute.xlu0 0
        %263 = vperm.xlu0 %262, %v187
        %v264 = vpop.permute.xlu0 %263
        %265 = vset.pattern.permute.xlu0 0
        %266 = vperm.xlu0 %265, %v188
        %v267 = vpop.permute.xlu0 %266
        %268 = vset.pattern.permute.xlu0 0
        %269 = vperm.xlu0 %268, %v189
        %v270 = vpop.permute.xlu0 %269
        %271 = vset.pattern.permute.xlu0 0
        %272 = vperm.xlu0 %271, %v190
        %v273 = vpop.permute.xlu0 %272
        %274 = vset.pattern.permute.xlu0 0
        %275 = vperm.xlu0 %274, %v191
        %v276 = vpop.permute.xlu0 %275
        %277 = vset.pattern.permute.xlu0 0
        %278 = vperm.xlu0 %277, %v192
        %v279 = vpop.permute.xlu0 %278
        %280 = vset.pattern.permute.xlu0 0
        %281 = vperm.xlu0 %280, %v193
        %v282 = vpop.permute.xlu0 %281
        %283 = vset.pattern.permute.xlu0 0
        %284 = vperm.xlu0 %283, %v194
        %v285 = vpop.permute.xlu0 %284
        %286 = vset.pattern.permute.xlu0 0
        %287 = vperm.xlu0 %286, %v195
        %v288 = vpop.permute.xlu0 %287
        %289 = vset.pattern.permute.xlu0 0
        %290 = vperm.xlu0 %289, %v196
        %v291 = vpop.permute.xlu0 %290
        %292 = vset.pattern.permute.xlu0 0
        %293 = vperm.xlu0 %292, %v197
        %v294 = vpop.permute.xlu0 %293
        %295 = vset.pattern.permute.xlu0 0
        %296 = vperm.xlu0 %295, %v198
        %v297 = vpop.permute.xlu0 %296
        %298 = vset.pattern.permute.xlu0 0
        %299 = vperm.xlu0 %298, %v199
        %v300 = vpop.permute.xlu0 %299
        %301 = vset.pattern.permute.xlu0 0
        %302 = vperm.xlu0 %301, %v200
        %v303 = vpop.permute.xlu0 %302
        %304 = vset.pattern.permute.xlu0 0
        %305 = vperm.xlu0 %304, %v201
        %v306 = vpop.permute.xlu0 %305
        %307 = vset.pattern.permute.xlu0 0
        %308 = vperm.xlu0 %307, %v202
        %v309 = vpop.permute.xlu0 %308
        %310 = vset.pattern.permute.xlu0 0
        %311 = vperm.xlu0 %310, %v203
        %v312 = vpop.permute.xlu0 %311
        %313 = vset.pattern.permute.xlu0 0
        %314 = vperm.xlu0 %313, %v204
        %v315 = vpop.permute.xlu0 %314
        %316 = vset.pattern.permute.xlu0 0
        %317 = vperm.xlu0 %316, %v205
        %v318 = vpop.permute.xlu0 %317
        %319 = vset.pattern.permute.xlu0 0
        %320 = vperm.xlu0 %319, %v206
        %v321 = vpop.permute.xlu0 %320
        %322 = vset.pattern.permute.xlu0 0
        %323 = vperm.xlu0 %322, %v207
        %v324 = vpop.permute.xlu0 %323
        %325 = vset.pattern.permute.xlu0 0
        %326 = vperm.xlu0 %325, %v208
        %v327 = vpop.permute.xlu0 %326
        %328 = vset.pattern.permute.xlu0 0
        %329 = vperm.xlu0 %328, %v209
        %v330 = vpop.permute.xlu0 %329
        %331 = vset.pattern.permute.xlu0 0
        %332 = vperm.xlu0 %331, %v210
        %v333 = vpop.permute.xlu0 %332
        %334 = vset.pattern.permute.xlu0 0
        %335 = vperm.xlu0 %334, %v211
        %v336 = vpop.permute.xlu0 %335
        %337 = vset.pattern.permute.xlu0 0
        %338 = vperm.xlu0 %337, %v212
        %v339 = vpop.permute.xlu0 %338
        %340 = vset.pattern.permute.xlu0 0
        %341 = vperm.xlu0 %340, %v213
        %v342 = vpop.permute.xlu0 %341
        %343 = vset.pattern.permute.xlu0 0
        %344 = vperm.xlu0 %343, %v214
        %v345 = vpop.permute.xlu0 %344
        %346 = vset.pattern.permute.xlu0 0
        %347 = vperm.xlu0 %346, %v215
        %v348 = vpop.permute.xlu0 %347
        %349 = vset.pattern.permute.xlu0 0
        %350 = vperm.xlu0 %349, %v216
        %v351 = vpop.permute.xlu0 %350
        %352 = vset.pattern.permute.xlu0 0
        %353 = vperm.xlu0 %352, %v217
        %v354 = vpop.permute.xlu0 %353
        %355 = vset.pattern.permute.xlu0 0
        %356 = vperm.xlu0 %355, %v218
        %v357 = vpop.permute.xlu0 %356
        %358 = vset.pattern.permute.xlu0 0
        %359 = vperm.xlu0 %358, %v219
        %v360 = vpop.permute.xlu0 %359
        %361 = vset.pattern.permute.xlu0 0
        %362 = vperm.xlu0 %361, %v220
        %v363 = vpop.permute.xlu0 %362
        %364 = vset.pattern.permute.xlu0 0
        %365 = vperm.xlu0 %364, %v221
        %v366 = vpop.permute.xlu0 %365
        %367 = vset.pattern.permute.xlu0 0
        %368 = vperm.xlu0 %367, %v222
        %v369 = vpop.permute.xlu0 %368
        %370 = vset.pattern.permute.xlu0 0
        %371 = vperm.xlu0 %370, %v223
        %v372 = vpop.permute.xlu0 %371
        %373 = vset.pattern.permute.xlu0 0
        %374 = vperm.xlu0 %373, %v224
        %v375 = vpop.permute.xlu0 %374
        %376 = vset.pattern.permute.xlu0 0
        %377 = vperm.xlu0 %376, %v225
        %v378 = vpop.permute.xlu0 %377
        %379 = vset.pattern.permute.xlu0 0
        %380 = vperm.xlu0 %379, %v226
        %v381 = vpop.permute.xlu0 %380
        %382 = vset.pattern.permute.xlu0 0
        %383 = vperm.xlu0 %382, %v227
        %v384 = vpop.permute.xlu0 %383
        %385 = vset.pattern.permute.xlu0 0
        %386 = vperm.xlu0 %385, %v228
        %v387 = vpop.permute.xlu0 %386
        %388 = vset.pattern.permute.xlu0 0
        %389 = vperm.xlu0 %388, %v229
        %v390 = vpop.permute.xlu0 %389
        %391 = vset.pattern.permute.xlu0 0
        %392 = vperm.xlu0 %391, %v230
        %v393 = vpop.permute.xlu0 %392
        %394 = vset.pattern.permute.xlu0 0
        %395 = vperm.xlu0 %394, %v231
        %v396 = vpop.permute.xlu0 %395
        %397 = vset.pattern.permute.xlu0 0
        %398 = vperm.xlu0 %397, %v232
        %v399 = vpop.permute.xlu0 %398
        %400 = vset.pattern.permute.xlu0 0
        %401 = vperm.xlu0 %400, %v233
        %v402 = vpop.permute.xlu0 %401
        %403 = vset.pattern.permute.xlu0 0
        %404 = vperm.xlu0 %403, %v234
        %v405 = vpop.permute.xlu0 %404
        %406 = vset.pattern.permute.xlu0 0
        %407 = vperm.xlu0 %406, %v235
        %v408 = vpop.permute.xlu0 %407
        %409 = vset.pattern.permute.xlu0 0
        %410 = vperm.xlu0 %409, %v236
        %v411 = vpop.permute.xlu0 %410
        %412 = vset.pattern.permute.xlu0 0
        %413 = vperm.xlu0 %412, %v237
        %v414 = vpop.permute.xlu0 %413
        %415 = vset.pattern.permute.xlu0 0
        %416 = vperm.xlu0 %415, %v238
        %v417 = vpop.permute.xlu0 %416
        %418 = vset.pattern.permute.xlu0 0
        %419 = vperm.xlu0 %418, %v239
        %v420 = vpop.permute.xlu0 %419
        %421 = vset.pattern.permute.xlu0 0
        %422 = vperm.xlu0 %421, %v240
        %v423 = vpop.permute.xlu0 %422
        %424 = vset.pattern.permute.xlu0 0
        %425 = vperm.xlu0 %424, %v241
        %v426 = vpop.permute.xlu0 %425
        %427 = vset.pattern.permute.xlu0 0
        %428 = vperm.xlu0 %427, %v242
        %v429 = vpop.permute.xlu0 %428
        %430 = vset.pattern.permute.xlu0 0
        %431 = vperm.xlu0 %430, %v243
        %v432 = vpop.permute.xlu0 %431
        %433 = vset.pattern.permute.xlu0 0
        %434 = vperm.xlu0 %433, %v244
        %v435 = vpop.permute.xlu0 %434
        %436 = vset.pattern.permute.xlu0 0
        %437 = vperm.xlu0 %436, %v245
        %v438 = vpop.permute.xlu0 %437
        %439 = vset.pattern.permute.xlu0 0
        %440 = vperm.xlu0 %439, %v246
        %v441 = vpop.permute.xlu0 %440
        %442 = vset.pattern.permute.xlu0 0
        %443 = vperm.xlu0 %442, %v247
        %v444 = vpop.permute.xlu0 %443
        %445 = vset.pattern.permute.xlu0 0
        %446 = vperm.xlu0 %445, %v248
        %v447 = vpop.permute.xlu0 %446
        %vm448 = vcmp.eq.s32.totalorder %v258, %v254
        %vm449 = vcmp.eq.s32.totalorder %v258, %v255
        %vm450 = vcmp.eq.s32.totalorder %v261, %v254
        %vm451 = vcmp.eq.s32.totalorder %v261, %v255
        %vm452 = vcmp.eq.s32.totalorder %v264, %v254
        %vm453 = vcmp.eq.s32.totalorder %v264, %v255
        %vm454 = vcmp.eq.s32.totalorder %v267, %v254
        %vm455 = vcmp.eq.s32.totalorder %v267, %v255
        %vm456 = vcmp.eq.s32.totalorder %v270, %v254
        %vm457 = vcmp.eq.s32.totalorder %v270, %v255
        %vm458 = vcmp.eq.s32.totalorder %v273, %v254
        %vm459 = vcmp.eq.s32.totalorder %v273, %v255
        %vm460 = vcmp.eq.s32.totalorder %v276, %v254
        %vm461 = vcmp.eq.s32.totalorder %v276, %v255
        %vm462 = vcmp.eq.s32.totalorder %v279, %v254
        %vm463 = vcmp.eq.s32.totalorder %v279, %v255
        %vm464 = vcmp.eq.s32.totalorder %v282, %v254
        %vm465 = vcmp.eq.s32.totalorder %v282, %v255
        %vm466 = vcmp.eq.s32.totalorder %v285, %v254
        %vm467 = vcmp.eq.s32.totalorder %v285, %v255
        %vm468 = vcmp.eq.s32.totalorder %v288, %v254
        %vm469 = vcmp.eq.s32.totalorder %v288, %v255
        %vm470 = vcmp.eq.s32.totalorder %v291, %v254
        %vm471 = vcmp.eq.s32.totalorder %v291, %v255
        %vm472 = vcmp.eq.s32.totalorder %v294, %v254
        %vm473 = vcmp.eq.s32.totalorder %v294, %v255
        %vm474 = vcmp.eq.s32.totalorder %v297, %v254
        %vm475 = vcmp.eq.s32.totalorder %v297, %v255
        %vm476 = vcmp.eq.s32.totalorder %v300, %v254
        %vm477 = vcmp.eq.s32.totalorder %v300, %v255
        %vm478 = vcmp.eq.s32.totalorder %v303, %v254
        %vm479 = vcmp.eq.s32.totalorder %v303, %v255
        %vm480 = vcmp.eq.s32.totalorder %v306, %v254
        %vm481 = vcmp.eq.s32.totalorder %v306, %v255
        %vm482 = vcmp.eq.s32.totalorder %v309, %v254
        %vm483 = vcmp.eq.s32.totalorder %v309, %v255
        %vm484 = vcmp.eq.s32.totalorder %v312, %v254
        %vm485 = vcmp.eq.s32.totalorder %v312, %v255
        %vm486 = vcmp.eq.s32.totalorder %v315, %v254
        %vm487 = vcmp.eq.s32.totalorder %v315, %v255
        %vm488 = vcmp.eq.s32.totalorder %v318, %v254
        %vm489 = vcmp.eq.s32.totalorder %v318, %v255
        %vm490 = vcmp.eq.s32.totalorder %v321, %v254
        %vm491 = vcmp.eq.s32.totalorder %v321, %v255
        %vm492 = vcmp.eq.s32.totalorder %v324, %v254
        %vm493 = vcmp.eq.s32.totalorder %v324, %v255
        %vm494 = vcmp.eq.s32.totalorder %v327, %v254
        %vm495 = vcmp.eq.s32.totalorder %v327, %v255
        %vm496 = vcmp.eq.s32.totalorder %v330, %v254
        %vm497 = vcmp.eq.s32.totalorder %v330, %v255
        %vm498 = vcmp.eq.s32.totalorder %v333, %v254
        %vm499 = vcmp.eq.s32.totalorder %v333, %v255
        %vm500 = vcmp.eq.s32.totalorder %v336, %v254
        %vm501 = vcmp.eq.s32.totalorder %v336, %v255
        %vm502 = vcmp.eq.s32.totalorder %v339, %v254
        %vm503 = vcmp.eq.s32.totalorder %v339, %v255
        %vm504 = vcmp.eq.s32.totalorder %v342, %v254
        %vm505 = vcmp.eq.s32.totalorder %v342, %v255
        %vm506 = vcmp.eq.s32.totalorder %v345, %v254
        %vm507 = vcmp.eq.s32.totalorder %v345, %v255
        %vm508 = vcmp.eq.s32.totalorder %v348, %v254
        %vm509 = vcmp.eq.s32.totalorder %v348, %v255
        %vm510 = vcmp.eq.s32.totalorder %v351, %v254
        %vm511 = vcmp.eq.s32.totalorder %v351, %v255
        %vm512 = vcmp.eq.s32.totalorder %v354, %v254
        %vm513 = vcmp.eq.s32.totalorder %v354, %v255
        %vm514 = vcmp.eq.s32.totalorder %v357, %v254
        %vm515 = vcmp.eq.s32.totalorder %v357, %v255
        %vm516 = vcmp.eq.s32.totalorder %v360, %v254
        %vm517 = vcmp.eq.s32.totalorder %v360, %v255
        %vm518 = vcmp.eq.s32.totalorder %v363, %v254
        %vm519 = vcmp.eq.s32.totalorder %v363, %v255
        %vm520 = vcmp.eq.s32.totalorder %v366, %v254
        %vm521 = vcmp.eq.s32.totalorder %v366, %v255
        %vm522 = vcmp.eq.s32.totalorder %v369, %v254
        %vm523 = vcmp.eq.s32.totalorder %v369, %v255
        %vm524 = vcmp.eq.s32.totalorder %v372, %v254
        %vm525 = vcmp.eq.s32.totalorder %v372, %v255
        %vm526 = vcmp.eq.s32.totalorder %v375, %v254
        %vm527 = vcmp.eq.s32.totalorder %v375, %v255
        %vm528 = vcmp.eq.s32.totalorder %v378, %v254
        %vm529 = vcmp.eq.s32.totalorder %v378, %v255
        %vm530 = vcmp.eq.s32.totalorder %v381, %v254
        %vm531 = vcmp.eq.s32.totalorder %v381, %v255
        %vm532 = vcmp.eq.s32.totalorder %v384, %v254
        %vm533 = vcmp.eq.s32.totalorder %v384, %v255
        %vm534 = vcmp.eq.s32.totalorder %v387, %v254
        %vm535 = vcmp.eq.s32.totalorder %v387, %v255
        %vm536 = vcmp.eq.s32.totalorder %v390, %v254
        %vm537 = vcmp.eq.s32.totalorder %v390, %v255
        %vm538 = vcmp.eq.s32.totalorder %v393, %v254
        %vm539 = vcmp.eq.s32.totalorder %v393, %v255
        %vm540 = vcmp.eq.s32.totalorder %v396, %v254
        %vm541 = vcmp.eq.s32.totalorder %v396, %v255
        %vm542 = vcmp.eq.s32.totalorder %v399, %v254
        %vm543 = vcmp.eq.s32.totalorder %v399, %v255
        %vm544 = vcmp.eq.s32.totalorder %v402, %v254
        %vm545 = vcmp.eq.s32.totalorder %v402, %v255
        %vm546 = vcmp.eq.s32.totalorder %v405, %v254
        %vm547 = vcmp.eq.s32.totalorder %v405, %v255
        %vm548 = vcmp.eq.s32.totalorder %v408, %v254
        %vm549 = vcmp.eq.s32.totalorder %v408, %v255
        %vm550 = vcmp.eq.s32.totalorder %v411, %v254
        %vm551 = vcmp.eq.s32.totalorder %v411, %v255
        %vm552 = vcmp.eq.s32.totalorder %v414, %v254
        %vm553 = vcmp.eq.s32.totalorder %v414, %v255
        %vm554 = vcmp.eq.s32.totalorder %v417, %v254
        %vm555 = vcmp.eq.s32.totalorder %v417, %v255
        %vm556 = vcmp.eq.s32.totalorder %v420, %v254
        %vm557 = vcmp.eq.s32.totalorder %v420, %v255
        %vm558 = vcmp.eq.s32.totalorder %v423, %v254
        %vm559 = vcmp.eq.s32.totalorder %v423, %v255
        %vm560 = vcmp.eq.s32.totalorder %v426, %v254
        %vm561 = vcmp.eq.s32.totalorder %v426, %v255
        %vm562 = vcmp.eq.s32.totalorder %v429, %v254
        %vm563 = vcmp.eq.s32.totalorder %v429, %v255
        %vm564 = vcmp.eq.s32.totalorder %v432, %v254
        %vm565 = vcmp.eq.s32.totalorder %v432, %v255
        %vm566 = vcmp.eq.s32.totalorder %v435, %v254
        %vm567 = vcmp.eq.s32.totalorder %v435, %v255
        %vm568 = vcmp.eq.s32.totalorder %v438, %v254
        %vm569 = vcmp.eq.s32.totalorder %v438, %v255
        %vm570 = vcmp.eq.s32.totalorder %v441, %v254
        %vm571 = vcmp.eq.s32.totalorder %v441, %v255
        %vm572 = vcmp.eq.s32.totalorder %v444, %v254
        %vm573 = vcmp.eq.s32.totalorder %v444, %v255
        %vm574 = vcmp.eq.s32.totalorder %v447, %v254
        %vm575 = vcmp.eq.s32.totalorder %v447, %v255
        %v576 = vsel %vm448, 1, 0
        %v577 = vsel %vm449, 1, 0
        %v578 = vsel %vm450, 1, 0
        %v579 = vsel %vm451, 1, 0
        %v580 = vsel %vm452, 1, 0
        %v581 = vsel %vm453, 1, 0
        %v582 = vsel %vm454, 1, 0
        %v583 = vsel %vm455, 1, 0
        %v584 = vsel %vm456, 1, 0
        %v585 = vsel %vm457, 1, 0
        %v586 = vsel %vm458, 1, 0
        %v587 = vsel %vm459, 1, 0
        %v588 = vsel %vm460, 1, 0
        %v589 = vsel %vm461, 1, 0
        %v590 = vsel %vm462, 1, 0
        %v591 = vsel %vm463, 1, 0
        %v592 = vsel %vm464, 1, 0
        %v593 = vsel %vm465, 1, 0
        %v594 = vsel %vm466, 1, 0
        %v595 = vsel %vm467, 1, 0
        %v596 = vsel %vm468, 1, 0
        %v597 = vsel %vm469, 1, 0
        %v598 = vsel %vm470, 1, 0
        %v599 = vsel %vm471, 1, 0
        %v600 = vsel %vm472, 1, 0
        %v601 = vsel %vm473, 1, 0
        %v602 = vsel %vm474, 1, 0
        %v603 = vsel %vm475, 1, 0
        %v604 = vsel %vm476, 1, 0
        %v605 = vsel %vm477, 1, 0
        %v606 = vsel %vm478, 1, 0
        %v607 = vsel %vm479, 1, 0
        %v608 = vsel %vm480, 1, 0
        %v609 = vsel %vm481, 1, 0
        %v610 = vsel %vm482, 1, 0
        %v611 = vsel %vm483, 1, 0
        %v612 = vsel %vm484, 1, 0
        %v613 = vsel %vm485, 1, 0
        %v614 = vsel %vm486, 1, 0
        %v615 = vsel %vm487, 1, 0
        %v616 = vsel %vm488, 1, 0
        %v617 = vsel %vm489, 1, 0
        %v618 = vsel %vm490, 1, 0
        %v619 = vsel %vm491, 1, 0
        %v620 = vsel %vm492, 1, 0
        %v621 = vsel %vm493, 1, 0
        %v622 = vsel %vm494, 1, 0
        %v623 = vsel %vm495, 1, 0
        %v624 = vsel %vm496, 1, 0
        %v625 = vsel %vm497, 1, 0
        %v626 = vsel %vm498, 1, 0
        %v627 = vsel %vm499, 1, 0
        %v628 = vsel %vm500, 1, 0
        %v629 = vsel %vm501, 1, 0
        %v630 = vsel %vm502, 1, 0
        %v631 = vsel %vm503, 1, 0
        %v632 = vsel %vm504, 1, 0
        %v633 = vsel %vm505, 1, 0
        %v634 = vsel %vm506, 1, 0
        %v635 = vsel %vm507, 1, 0
        %v636 = vsel %vm508, 1, 0
        %v637 = vsel %vm509, 1, 0
        %v638 = vsel %vm510, 1, 0
        %v639 = vsel %vm511, 1, 0
        %v640 = vsel %vm512, 1, 0
        %v641 = vsel %vm513, 1, 0
        %v642 = vsel %vm514, 1, 0
        %v643 = vsel %vm515, 1, 0
        %v644 = vsel %vm516, 1, 0
        %v645 = vsel %vm517, 1, 0
        %v646 = vsel %vm518, 1, 0
        %v647 = vsel %vm519, 1, 0
        %v648 = vsel %vm520, 1, 0
        %v649 = vsel %vm521, 1, 0
        %v650 = vsel %vm522, 1, 0
        %v651 = vsel %vm523, 1, 0
        %v652 = vsel %vm524, 1, 0
        %v653 = vsel %vm525, 1, 0
        %v654 = vsel %vm526, 1, 0
        %v655 = vsel %vm527, 1, 0
        %v656 = vsel %vm528, 1, 0
        %v657 = vsel %vm529, 1, 0
        %v658 = vsel %vm530, 1, 0
        %v659 = vsel %vm531, 1, 0
        %v660 = vsel %vm532, 1, 0
        %v661 = vsel %vm533, 1, 0
        %v662 = vsel %vm534, 1, 0
        %v663 = vsel %vm535, 1, 0
        %v664 = vsel %vm536, 1, 0
        %v665 = vsel %vm537, 1, 0
        %v666 = vsel %vm538, 1, 0
        %v667 = vsel %vm539, 1, 0
        %v668 = vsel %vm540, 1, 0
        %v669 = vsel %vm541, 1, 0
        %v670 = vsel %vm542, 1, 0
        %v671 = vsel %vm543, 1, 0
        %v672 = vsel %vm544, 1, 0
        %v673 = vsel %vm545, 1, 0
        %v674 = vsel %vm546, 1, 0
        %v675 = vsel %vm547, 1, 0
        %v676 = vsel %vm548, 1, 0
        %v677 = vsel %vm549, 1, 0
        %v678 = vsel %vm550, 1, 0
        %v679 = vsel %vm551, 1, 0
        %v680 = vsel %vm552, 1, 0
        %v681 = vsel %vm553, 1, 0
        %v682 = vsel %vm554, 1, 0
        %v683 = vsel %vm555, 1, 0
        %v684 = vsel %vm556, 1, 0
        %v685 = vsel %vm557, 1, 0
        %v686 = vsel %vm558, 1, 0
        %v687 = vsel %vm559, 1, 0
        %v688 = vsel %vm560, 1, 0
        %v689 = vsel %vm561, 1, 0
        %v690 = vsel %vm562, 1, 0
        %v691 = vsel %vm563, 1, 0
        %v692 = vsel %vm564, 1, 0
        %v693 = vsel %vm565, 1, 0
        %v694 = vsel %vm566, 1, 0
        %v695 = vsel %vm567, 1, 0
        %v696 = vsel %vm568, 1, 0
        %v697 = vsel %vm569, 1, 0
        %v698 = vsel %vm570, 1, 0
        %v699 = vsel %vm571, 1, 0
        %v700 = vsel %vm572, 1, 0
        %v701 = vsel %vm573, 1, 0
        %v702 = vsel %vm574, 1, 0
        %v703 = vsel %vm575, 1, 0
        %v704 = vcvt.s32.f32 %v576
        %v705 = vcvt.s32.f32 %v577
        %v706 = vcvt.s32.f32 %v578
        %v707 = vcvt.s32.f32 %v579
        %v708 = vcvt.s32.f32 %v580
        %v709 = vcvt.s32.f32 %v581
        %v710 = vcvt.s32.f32 %v582
        %v711 = vcvt.s32.f32 %v583
        %v712 = vcvt.s32.f32 %v584
        %v713 = vcvt.s32.f32 %v585
        %v714 = vcvt.s32.f32 %v586
        %v715 = vcvt.s32.f32 %v587
        %v716 = vcvt.s32.f32 %v588
        %v717 = vcvt.s32.f32 %v589
        %v718 = vcvt.s32.f32 %v590
        %v719 = vcvt.s32.f32 %v591
        %v720 = vcvt.s32.f32 %v592
        %v721 = vcvt.s32.f32 %v593
        %v722 = vcvt.s32.f32 %v594
        %v723 = vcvt.s32.f32 %v595
        %v724 = vcvt.s32.f32 %v596
        %v725 = vcvt.s32.f32 %v597
        %v726 = vcvt.s32.f32 %v598
        %v727 = vcvt.s32.f32 %v599
        %v728 = vcvt.s32.f32 %v600
        %v729 = vcvt.s32.f32 %v601
        %v730 = vcvt.s32.f32 %v602
        %v731 = vcvt.s32.f32 %v603
        %v732 = vcvt.s32.f32 %v604
        %v733 = vcvt.s32.f32 %v605
        %v734 = vcvt.s32.f32 %v606
        %v735 = vcvt.s32.f32 %v607
        %v736 = vcvt.s32.f32 %v608
        %v737 = vcvt.s32.f32 %v609
        %v738 = vcvt.s32.f32 %v610
        %v739 = vcvt.s32.f32 %v611
        %v740 = vcvt.s32.f32 %v612
        %v741 = vcvt.s32.f32 %v613
        %v742 = vcvt.s32.f32 %v614
        %v743 = vcvt.s32.f32 %v615
        %v744 = vcvt.s32.f32 %v616
        %v745 = vcvt.s32.f32 %v617
        %v746 = vcvt.s32.f32 %v618
        %v747 = vcvt.s32.f32 %v619
        %v748 = vcvt.s32.f32 %v620
        %v749 = vcvt.s32.f32 %v621
        %v750 = vcvt.s32.f32 %v622
        %v751 = vcvt.s32.f32 %v623
        %v752 = vcvt.s32.f32 %v624
        %v753 = vcvt.s32.f32 %v625
        %v754 = vcvt.s32.f32 %v626
        %v755 = vcvt.s32.f32 %v627
        %v756 = vcvt.s32.f32 %v628
        %v757 = vcvt.s32.f32 %v629
        %v758 = vcvt.s32.f32 %v630
        %v759 = vcvt.s32.f32 %v631
        %v760 = vcvt.s32.f32 %v632
        %v761 = vcvt.s32.f32 %v633
        %v762 = vcvt.s32.f32 %v634
        %v763 = vcvt.s32.f32 %v635
        %v764 = vcvt.s32.f32 %v636
        %v765 = vcvt.s32.f32 %v637
        %v766 = vcvt.s32.f32 %v638
        %v767 = vcvt.s32.f32 %v639
        %v768 = vcvt.s32.f32 %v640
        %v769 = vcvt.s32.f32 %v641
        %v770 = vcvt.s32.f32 %v642
        %v771 = vcvt.s32.f32 %v643
        %v772 = vcvt.s32.f32 %v644
        %v773 = vcvt.s32.f32 %v645
        %v774 = vcvt.s32.f32 %v646
        %v775 = vcvt.s32.f32 %v647
        %v776 = vcvt.s32.f32 %v648
        %v777 = vcvt.s32.f32 %v649
        %v778 = vcvt.s32.f32 %v650
        %v779 = vcvt.s32.f32 %v651
        %v780 = vcvt.s32.f32 %v652
        %v781 = vcvt.s32.f32 %v653
        %v782 = vcvt.s32.f32 %v654
        %v783 = vcvt.s32.f32 %v655
        %v784 = vcvt.s32.f32 %v656
        %v785 = vcvt.s32.f32 %v657
        %v786 = vcvt.s32.f32 %v658
        %v787 = vcvt.s32.f32 %v659
        %v788 = vcvt.s32.f32 %v660
        %v789 = vcvt.s32.f32 %v661
        %v790 = vcvt.s32.f32 %v662
        %v791 = vcvt.s32.f32 %v663
        %v792 = vcvt.s32.f32 %v664
        %v793 = vcvt.s32.f32 %v665
        %v794 = vcvt.s32.f32 %v666
        %v795 = vcvt.s32.f32 %v667
        %v796 = vcvt.s32.f32 %v668
        %v797 = vcvt.s32.f32 %v669
        %v798 = vcvt.s32.f32 %v670
        %v799 = vcvt.s32.f32 %v671
        %v800 = vcvt.s32.f32 %v672
        %v801 = vcvt.s32.f32 %v673
        %v802 = vcvt.s32.f32 %v674
        %v803 = vcvt.s32.f32 %v675
        %v804 = vcvt.s32.f32 %v676
        %v805 = vcvt.s32.f32 %v677
        %v806 = vcvt.s32.f32 %v678
        %v807 = vcvt.s32.f32 %v679
        %v808 = vcvt.s32.f32 %v680
        %v809 = vcvt.s32.f32 %v681
        %v810 = vcvt.s32.f32 %v682
        %v811 = vcvt.s32.f32 %v683
        %v812 = vcvt.s32.f32 %v684
        %v813 = vcvt.s32.f32 %v685
        %v814 = vcvt.s32.f32 %v686
        %v815 = vcvt.s32.f32 %v687
        %v816 = vcvt.s32.f32 %v688
        %v817 = vcvt.s32.f32 %v689
        %v818 = vcvt.s32.f32 %v690
        %v819 = vcvt.s32.f32 %v691
        %v820 = vcvt.s32.f32 %v692
        %v821 = vcvt.s32.f32 %v693
        %v822 = vcvt.s32.f32 %v694
        %v823 = vcvt.s32.f32 %v695
        %v824 = vcvt.s32.f32 %v696
        %v825 = vcvt.s32.f32 %v697
        %v826 = vcvt.s32.f32 %v698
        %v827 = vcvt.s32.f32 %v699
        %v828 = vcvt.s32.f32 %v700
        %v829 = vcvt.s32.f32 %v701
        %v830 = vcvt.s32.f32 %v702
        %v831 = vcvt.s32.f32 %v703
        %v832 = vld [vmem:[#allocation2] sm:$0xff]
        %v833 = vld [vmem:[#allocation2 + $0x8] sm:$0xff]
        %v834 = vld [vmem:[%s170] sm:$0xff]
        %v835 = vld [vmem:[%s170 + $0x8] sm:$0xff]
        %v836 = vld [vmem:[%s170 + $0x10] sm:$0xff]
        %v837 = vld [vmem:[%s170 + $0x18] sm:$0xff]
        %838 = vmatprep.subr.mxu0 %v705
        %839 = vmatpush1.msra.mxu0 %v704
        %840 = vmatprep.subr.mxu0 %v707
        %841 = vmatpush1.msra.mxu0 %v706
        %842 = vmatprep.subr.mxu0 %v709
        %843 = vmatpush1.msra.mxu0 %v708
        %844 = vmatprep.subr.mxu0 %v711
        %845 = vmatpush1.msra.mxu0 %v710
        %846 = vmatprep.subr.mxu0 %v713
        %847 = vmatpush1.msra.mxu0 %v712
        %848 = vmatprep.subr.mxu0 %v715
        %849 = vmatpush1.msra.mxu0 %v714
        %850 = vmatprep.subr.mxu0 %v717
        %851 = vmatpush1.msra.mxu0 %v716
        %852 = vmatprep.subr.mxu0 %v719
        %853 = vmatpush1.msra.mxu0 %v718
        %854 = vmatprep.subr.mxu0 %v721
        %855 = vmatpush1.msra.mxu0 %v720
        %856 = vmatprep.subr.mxu0 %v723
        %857 = vmatpush1.msra.mxu0 %v722
        %858 = vmatprep.subr.mxu0 %v725
        %859 = vmatpush1.msra.mxu0 %v724
        %860 = vmatprep.subr.mxu0 %v727
        %861 = vmatpush1.msra.mxu0 %v726
        %862 = vmatprep.subr.mxu0 %v729
        %863 = vmatpush1.msra.mxu0 %v728
        %864 = vmatprep.subr.mxu0 %v731
        %865 = vmatpush1.msra.mxu0 %v730
        %866 = vmatprep.subr.mxu0 %v733
        %867 = vmatpush1.msra.mxu0 %v732
        %868 = vmatprep.subr.mxu0 %v735
        %869 = vmatpush1.msra.mxu0 %v734
        %870 = vmatprep.subr.mxu0 %v737
        %871 = vmatpush1.msra.mxu0 %v736
        %872 = vmatprep.subr.mxu0 %v739
        %873 = vmatpush1.msra.mxu0 %v738
        %874 = vmatprep.subr.mxu0 %v741
        %875 = vmatpush1.msra.mxu0 %v740
        %876 = vmatprep.subr.mxu0 %v743
        %877 = vmatpush1.msra.mxu0 %v742
        %878 = vmatprep.subr.mxu0 %v745
        %879 = vmatpush1.msra.mxu0 %v744
        %880 = vmatprep.subr.mxu0 %v747
        %881 = vmatpush1.msra.mxu0 %v746
        %882 = vmatprep.subr.mxu0 %v749
        %883 = vmatpush1.msra.mxu0 %v748
        %884 = vmatprep.subr.mxu0 %v751
        %885 = vmatpush1.msra.mxu0 %v750
        %886 = vmatprep.subr.mxu0 %v753
        %887 = vmatpush1.msra.mxu0 %v752
        %888 = vmatprep.subr.mxu0 %v755
        %889 = vmatpush1.msra.mxu0 %v754
        %890 = vmatprep.subr.mxu0 %v757
        %891 = vmatpush1.msra.mxu0 %v756
        %892 = vmatprep.subr.mxu0 %v759
        %893 = vmatpush1.msra.mxu0 %v758
        %894 = vmatprep.subr.mxu0 %v761
        %895 = vmatpush1.msra.mxu0 %v760
        %896 = vmatprep.subr.mxu0 %v763
        %897 = vmatpush1.msra.mxu0 %v762
        %898 = vmatprep.subr.mxu0 %v765
        %899 = vmatpush1.msra.mxu0 %v764
        %900 = vmatprep.subr.mxu0 %v767
        %901 = vmatpush1.msra.mxu0 %v766
        %902 = vmatprep.mubr.f32.mxu0 %v835
        %903 = vmatmul.mubr.f32.gmra.mrb[0].mxu0 %v834
        %v904 = vpop.f32.mrb[0].mxu0
        %v905 = vadd.f32 0.0, %v904
        %v906 = vpop.f32.mrb[0].mxu0
        %v907 = vadd.f32 0.0, %v906
        %908 = vdwg.mxu0
        %909 = vmatprep.subr.mxu0 %v769
        %910 = vmatpush1.msra.mxu0 %v768
        %911 = vmatprep.subr.mxu0 %v771
        %912 = vmatpush1.msra.mxu0 %v770
        %913 = vmatprep.subr.mxu0 %v773
        %914 = vmatpush1.msra.mxu0 %v772
        %915 = vmatprep.subr.mxu0 %v775
        %916 = vmatpush1.msra.mxu0 %v774
        %917 = vmatprep.subr.mxu0 %v777
        %918 = vmatpush1.msra.mxu0 %v776
        %919 = vmatprep.subr.mxu0 %v779
        %920 = vmatpush1.msra.mxu0 %v778
        %921 = vmatprep.subr.mxu0 %v781
        %922 = vmatpush1.msra.mxu0 %v780
        %923 = vmatprep.subr.mxu0 %v783
        %924 = vmatpush1.msra.mxu0 %v782
        %925 = vmatprep.subr.mxu0 %v785
        %926 = vmatpush1.msra.mxu0 %v784
        %927 = vmatprep.subr.mxu0 %v787
        %928 = vmatpush1.msra.mxu0 %v786
        %929 = vmatprep.subr.mxu0 %v789
        %930 = vmatpush1.msra.mxu0 %v788
        %931 = vmatprep.subr.mxu0 %v791
        %932 = vmatpush1.msra.mxu0 %v790
        %933 = vmatprep.subr.mxu0 %v793
        %934 = vmatpush1.msra.mxu0 %v792
        %935 = vmatprep.subr.mxu0 %v795
        %936 = vmatpush1.msra.mxu0 %v794
        %937 = vmatprep.subr.mxu0 %v797
        %938 = vmatpush1.msra.mxu0 %v796
        %939 = vmatprep.subr.mxu0 %v799
        %940 = vmatpush1.msra.mxu0 %v798
        %941 = vmatprep.subr.mxu0 %v801
        %942 = vmatpush1.msra.mxu0 %v800
        %943 = vmatprep.subr.mxu0 %v803
        %944 = vmatpush1.msra.mxu0 %v802
        %945 = vmatprep.subr.mxu0 %v805
        %946 = vmatpush1.msra.mxu0 %v804
        %947 = vmatprep.subr.mxu0 %v807
        %948 = vmatpush1.msra.mxu0 %v806
        %949 = vmatprep.subr.mxu0 %v809
        %950 = vmatpush1.msra.mxu0 %v808
        %951 = vmatprep.subr.mxu0 %v811
        %952 = vmatpush1.msra.mxu0 %v810
        %953 = vmatprep.subr.mxu0 %v813
        %954 = vmatpush1.msra.mxu0 %v812
        %955 = vmatprep.subr.mxu0 %v815
        %956 = vmatpush1.msra.mxu0 %v814
        %957 = vmatprep.subr.mxu0 %v817
        %958 = vmatpush1.msra.mxu0 %v816
        %959 = vmatprep.subr.mxu0 %v819
        %960 = vmatpush1.msra.mxu0 %v818
        %961 = vmatprep.subr.mxu0 %v821
        %962 = vmatpush1.msra.mxu0 %v820
        %963 = vmatprep.subr.mxu0 %v823
        %964 = vmatpush1.msra.mxu0 %v822
        %965 = vmatprep.subr.mxu0 %v825
        %966 = vmatpush1.msra.mxu0 %v824
        %967 = vmatprep.subr.mxu0 %v827
        %968 = vmatpush1.msra.mxu0 %v826
        %969 = vmatprep.subr.mxu0 %v829
        %970 = vmatpush1.msra.mxu0 %v828
        %971 = vmatprep.subr.mxu0 %v831
        %972 = vmatpush1.msra.mxu0 %v830
        %973 = vmatprep.mubr.f32.mxu0 %v837
        %974 = vmatmul.mubr.f32.gmra.mrb[0].mxu0 %v836
        %v975 = vpop.f32.mrb[0].mxu0
        %v976 = vadd.f32 %v905, %v975
        %v977 = vpop.f32.mrb[0].mxu0
        %v978 = vadd.f32 %v907, %v977
        %979 = vdwg.mxu0
        %v980 = vadd.f32 %v832, %v976
        %v981 = vadd.f32 %v833, %v978
        %982 = vst [vmem:[#allocation2] sm:$0xff] %v980
        %983 = vst [vmem:[#allocation2 + $0x8] sm:$0xff] %v981
        %p984 = scmp.eq.s32.totalorder %s21, 2
        // Predicated region
        $region33: #{tpu_custom_call.1} parent=27 // pred_check
          %p985 = pneg %p984
        $region34: #{tpu_custom_call.1} parent=27 // pred_check_branch
          %987 = sbr.rel (%p985) target = $region36
        $region35: #{tpu_custom_call.1} parent=27 // pred_region
          %s988 = scalar_lea.vmem [#allocation2], 7
          %v989 = vld [vmem:[%s988] ss:$8 sm:$0x3]
          %v990 = vld [vmem:[#allocation2] sm:$0xff]
          %v991 = vld [vmem:[#allocation2 + $0x8] sm:$0xff]
          %v992 = vmax.f32 %v989, 1.0
          %v994 = vlaneseq
          %v995 = vshrl.u32 %v994, 7
          %v996 = vsub.s32 0, %v995
          %v997 = vrot.slane %v992, %v996
          %v998 = vlaneseq
          %v999 = vshrl.u32 %v998, 7
          %v1000 = vsub.s32 1, %v999
          %v1001 = vrot.slane %v992, %v1000
          %v1004 = vrcp.pop %v997
          %v1005 = vmul.f32 %v990, %v1004
          %v1006 = vrcp.pop %v1001
          %v1007 = vmul.f32 %v991, %v1006
          %1008 = vst [vmem:[%s165] sm:$0xff] %v1005
          %1009 = vst [vmem:[%s165 + $0x8] sm:$0xff] %v1007
        $region36: #{tpu_custom_call.1} parent=27 // pred_fallthru
          _
        %s1010 = sand.u32 %s88, 1
        %s1011 = scalar_lea.sflag [#allocation4], %s1010
        %s1012 = sand.u32 %s88, 1
        %s1013 = smul.addr %s1012, 16
        %s1014 = scalar_lea.vmem [#allocation3], %s1013
        // Predicated region
        $region37: #{tpu_custom_call.1} parent=27 // pred_check
          %p1015 = pneg %p98
        $region38: #{tpu_custom_call.1} parent=27 // pred_check_branch
          %1017 = sbr.rel (%p1015) target = $region40
        $region39: #{tpu_custom_call.1} parent=27 // pred_region
          %s1018 = smul.u32 2, %s20
          %s1020 = ssub.s32 256, 256
          %1021 = vsyncadd %s1011, %s1020
          %s1022 = smul.addr %s1018, 128
          %s1023 = scalar_lea.hbm %s2, %s1022
          %s1025 = sshll.u32 %s1014, 4
          %s1026 = int_to_ptr.vmem [resolvable:$true] %s1025
          %1028 = dma.vmem_to_hbm [thread:$0]  %s1026, 256, %s1023, %s1011
        $region40: #{tpu_custom_call.1} parent=27 // pred_fallthru
          _
      $region28: #{tpu_custom_call.1} parent=5 // pred_fallthru
        _
      %p1029 = scmp.le.s32.totalorder 2, %s11
      // Predicated region
      $region41: #{tpu_custom_call.1} parent=5 // pred_check
        %p1030 = pneg %p1029
      $region42: #{tpu_custom_call.1} parent=5 // pred_check_branch
        %1032 = sbr.rel (%p1030) target = $region44
      $region43: #{tpu_custom_call.1} parent=5 // pred_region
        %s1033 = ssub.s32 %s11, 2
        // Predicated region
        $region45: #{tpu_custom_call.1} parent=43 // pred_check
          %p1034 = pneg %p104
        $region46: #{tpu_custom_call.1} parent=43 // pred_check_branch
          %1036 = sbr.rel (%p1034) target = $region48
        $region47: #{tpu_custom_call.1} parent=43 // pred_region
          %s1037 = sand.u32 %s89, 1
          %s1038 = scalar_lea.sflag [#allocation4], %s1037
          %s1039 = sand.u32 %s89, 1
          %s1040 = smul.addr %s1039, 16
          %s1041 = scalar_lea.vmem [#allocation3], %s1040
          %1042 = dma.done %s1038, 256
        $region48: #{tpu_custom_call.1} parent=43 // pred_fallthru
          _
      $region44: #{tpu_custom_call.1} parent=5 // pred_fallthru
        _
    $region6: #{tpu_custom_call.1} parent=1 // loop_footer
      %s15 = sadd.s32 1, %s11
    $region7: #{tpu_custom_call.1} parent=1 // loop_footer_branch
      %10 = sbr.rel target = $region3
    $region8: #{tpu_custom_call.1} parent=1 // loop_exit
      _
    %1043 = vsyncpa [#allocation4], 1
    %s1044 = scalar_lea.sflag [#allocation4], 1
    %1045 = vsyncpa %s1044, 1

</llo_original>
